<compile_context>
chip_gen: v6e
topology: v6e:2x2x1
jax: 0.10.0
libtpu: 0.0.40
codegen_flags: <defaults>
</compile_context>

<pallas_src>
import functools

import jax
import jax.numpy as jnp
from jax.experimental import pallas as pl
from jax.experimental.pallas import tpu as pltpu

TEMPERATURE = 0.05
_INV_T = 1.0 / TEMPERATURE   # 20.0, compile-time constant
# |x| <= 1 (enforced by a clamp in the wrapper) => x*_INV_T - _SHIFT <= 0, so a single
# fixed-shift exp pass is numerically safe (no per-row/column max passes needed).
_SHIFT = _INV_T
# Sentinel pad value: exp(_PAD*_INV_T - _SHIFT) == 0 exactly in f32, so padded entries
# contribute nothing to row or column sums without any masking.
_PAD = -1.0e4


def _round_up(a, b):
    return ((a + b - 1) // b) * b


def _norm_softmax_loss_kernel(x_ref, col_sum_ref, num_ref, *, n, tm, tiles_per_core):
    c = pl.program_id(0)            # core-parallel row group
    i = pl.program_id(1)            # row tile within the group (reduction axis)

    @pl.when(i == 0)
    def _init():
        col_sum_ref[...] = jnp.zeros_like(col_sum_ref)
        num_ref[...] = jnp.zeros_like(num_ref)

    g = c * tiles_per_core + i      # global row-tile index
    row0 = g * tm                   # first global row of this tile (multiple of 128)

    # ---- full-width pass: single exp, no masks (sentinel padding -> exact zeros) ----
    x = x_ref[...].astype(jnp.float32) * _INV_T          # (tm, P)
    e = jnp.exp(x - _SHIFT)                               # padded entries == 0.0

    # Running column sums (axis=0 sublane reduction; no transpose).
    col_sum_ref[...] += jnp.sum(e, axis=0, keepdims=True)  # (1, P)

    # Per-row logsumexp for this tile (guard fully-padded rows against log(0)).
    row_sum = jnp.sum(e, axis=1, keepdims=True)             # (tm, 1)
    row_valid = (jax.lax.broadcasted_iota(jnp.int32, (tm, 1), 0) + row0) < n
    row_lse = jnp.log(jnp.where(row_valid, row_sum, 1.0)) + _SHIFT

    # ---- diagonal sub-block only: (tm, tm) instead of (tm, P) ----
    start = pl.multiple_of(row0, 128)
    xd = x_ref[:, pl.ds(start, tm)].astype(jnp.float32) * _INV_T   # (tm, tm)
    lr = jax.lax.broadcasted_iota(jnp.int32, (tm, tm), 0)
    lc = jax.lax.broadcasted_iota(jnp.int32, (tm, tm), 1)
    # Row-side numerator 2*diag_r - row_lse_r scattered to lane r of this tile's
    # lane range; each lane is written exactly once so a plain store suffices.
    diag_num = jnp.where(lr == lc, 2.0 * xd - row_lse, 0.0)
    num_ref[:, pl.ds(start, tm)] = jnp.sum(diag_num, axis=0, keepdims=True)   # (1, tm)


def norm_softmax_loss(x):
    """x: (N, N) similarity matrix in [-1, 1]. Returns (loss_scalar, temperature)."""
    n, m = x.shape
    assert n == m, "this kernel assumes a square similarity matrix"

    # ---- per-generation VMEM budget (v7x has 64 MiB VMEM; v5e/v6e have 128 MiB) ----
    per_buf_budget = 4 * 1024 * 1024
    vmem_limit = 32 * 1024 * 1024
    try:
        if pltpu.get_tpu_info().vmem_capacity_bytes >= 100 * 1024 * 1024:
            per_buf_budget = 8 * 1024 * 1024
            vmem_limit = 64 * 1024 * 1024
    except Exception:
        pass

    # Row-tile size: multiple of 128 (lane-aligned diagonal sub-block + store), capped
    # by the per-buffer VMEM budget (bf16) and by half the padded row count (so the
    # 2-way core split doesn't force gratuitous padding).
    n128 = _round_up(n, 128)
    tm_budget = 128 * max(1, min(4, per_buf_budget // (n128 * 2 * 128)))
    tm = min(tm_budget, max(128, _round_up(-(-n // 2), 128)))
    tiles = -(-n // tm)
    nc = 2 if tiles >= 2 else 1          # core-parallel groups (megacore on v7x)
    tpc = -(-tiles // nc)                # row tiles per group
    p = nc * tpc * tm                    # padded (square) size, multiple of 128

    # Clamp (|x|<=1 contract protection), pad with the underflow sentinel, stream bf16.
    # All of this fuses into one XLA pad/cast pass over x.
    x_p = jnp.pad(
        jnp.clip(x.astype(jnp.float32), -1.0, 1.0),
        ((0, p - n), (0, p - n)),
        constant_values=_PAD,
    ).astype(jnp.bfloat16)

    kernel = functools.partial(
        _norm_softmax_loss_kernel, n=n, tm=tm, tiles_per_core=tpc
    )
    col_part, num_part = pl.pallas_call(
        kernel,
        out_shape=(
            jax.ShapeDtypeStruct((nc, 1, p), jnp.float32),  # per-group column exp-sums
            jax.ShapeDtypeStruct((nc, 1, p), jnp.float32),  # per-group 2*diag - row_lse
        ),
        grid=(nc, tpc),
        in_specs=[pl.BlockSpec((tm, p), lambda c, i: (c * tpc + i, 0))],
        out_specs=(
            pl.BlockSpec((None, 1, p), lambda c, i: (c, 0, 0)),
            pl.BlockSpec((None, 1, p), lambda c, i: (c, 0, 0)),
        ),
        compiler_params=pltpu.CompilerParams(
            dimension_semantics=("parallel", "arbitrary"),
            vmem_limit_bytes=vmem_limit,
        ),
    )(x_p)

    # ---- tiny O(P) epilogue: combine core partials, column logsumexp, final scalar ----
    col_sum = jnp.sum(col_part[:, 0, :], axis=0)     # (P,)
    num = jnp.sum(num_part[:, 0, :], axis=0)         # (P,)  (disjoint lane ranges)
    valid = jnp.arange(p) < n
    col_lse = jnp.log(jnp.where(valid, col_sum, 1.0)) + _SHIFT
    total = jnp.sum(jnp.where(valid, num - col_lse, 0.0))
    return -total / n, TEMPERATURE


def _reference(x):
    # Pure-JAX reference mirroring the PyTorch module (f32 math).
    xs = x.astype(jnp.float32) / TEMPERATURE
    i_logsm = jax.nn.log_softmax(xs, axis=1)
    j_logsm = jax.nn.log_softmax(xs.T, axis=1)
    loss_i = jnp.mean(jnp.diag(i_logsm))
    loss_j = jnp.mean(jnp.diag(j_logsm))
    return -loss_i - loss_j


if __name__ == "__main__":
    key = jax.random.PRNGKey(0)
    N, D = 8, 32
    # Realistic similarity matrix: cosine sims of normalized vectors.
    kv, kt = jax.random.split(key)
    v = jax.random.normal(kv, (N, D), dtype=jnp.float32)
    t = jax.random.normal(kt, (N, D), dtype=jnp.float32)
    v = v / jnp.linalg.norm(v, axis=1, keepdims=True)
    t = t / jnp.linalg.norm(t, axis=1, keepdims=True)
    x = v @ t.T  # (N, N) in [-1, 1]

    loss, temp = norm_softmax_loss(x)
    loss = jax.block_until_ready(loss)

    # The kernel streams x as bf16; compare against the reference computed on the same
    # bf16-rounded (and clamped) matrix so the check isolates the kernel math.
    x_seen = jnp.clip(x, -1.0, 1.0).astype(jnp.bfloat16).astype(jnp.float32)
    ref = _reference(x_seen)
    assert jnp.allclose(loss, ref, rtol=1e-4, atol=1e-4), (loss, ref)
    assert temp == TEMPERATURE
    print("KERNEL_OK")
</pallas_src>

<mosaic_0001>
module attributes {stable_mosaic.version = 11 : i64} {
  func.func @_norm_softmax_loss_kernel(%arg0: i32, %arg1: i32, %arg2: memref<128x128xbf16, #tpu.memory_space<vmem>>, %arg3: memref<1x1x128xf32, #tpu.memory_space<vmem>>, %arg4: memref<1x1x128xf32, #tpu.memory_space<vmem>>) attributes {dimension_semantics = [#tpu.dimension_semantics<parallel>, #tpu.dimension_semantics<arbitrary>], iteration_bounds = array<i64: 1, 1>, scalar_prefetch = 0 : i64, scratch_operands = 0 : i64, tpu.core_type = #tpu.core_type<tc>, window_params = [{transform_indices = @transform_0, window_bounds = array<i64: 128, 128>}, {transform_indices = @transform_1, window_bounds = array<i64: 1, 1, 128>}, {transform_indices = @transform_2, window_bounds = array<i64: 1, 1, 128>}]} {
    %c0_i32 = arith.constant 0 : i32
    %0 = arith.cmpi eq, %arg1, %c0_i32 : i32
    %1 = arith.extui %0 : i1 to i32
    %c0_i32_0 = arith.constant 0 : i32
    %2 = arith.cmpi ne, %1, %c0_i32_0 : i32
    scf.if %2 {
      %cst_20 = arith.constant 0.000000e+00 : f32
      %54 = vector.broadcast %cst_20 : f32 to vector<1x128xf32>
      %c0_21 = arith.constant 0 : index
      %c0_22 = arith.constant 0 : index
      %c0_23 = arith.constant 0 : index
      %55 = vector.load %arg3[%c0_21, %c0_22, %c0_23] : memref<1x1x128xf32, #tpu.memory_space<vmem>>, vector<1x1x128xf32>
      %56 = vector.shape_cast %55 : vector<1x1x128xf32> to vector<1x128xf32>
      %57 = vector.shape_cast %54 : vector<1x128xf32> to vector<1x1x128xf32>
      tpu.vector_store %arg3[%c0_21, %c0_22, %c0_23], %57 {strides = array<i32>} : memref<1x1x128xf32, #tpu.memory_space<vmem>>, vector<1x1x128xf32>,
      %cst_24 = arith.constant 0.000000e+00 : f32
      %58 = vector.broadcast %cst_24 : f32 to vector<1x128xf32>
      %c0_25 = arith.constant 0 : index
      %c0_26 = arith.constant 0 : index
      %c0_27 = arith.constant 0 : index
      %59 = vector.load %arg4[%c0_25, %c0_26, %c0_27] : memref<1x1x128xf32, #tpu.memory_space<vmem>>, vector<1x1x128xf32>
      %60 = vector.shape_cast %59 : vector<1x1x128xf32> to vector<1x128xf32>
      %61 = vector.shape_cast %58 : vector<1x128xf32> to vector<1x1x128xf32>
      tpu.vector_store %arg4[%c0_25, %c0_26, %c0_27], %61 {strides = array<i32>} : memref<1x1x128xf32, #tpu.memory_space<vmem>>, vector<1x1x128xf32>,
    } else {
    }
    %c1_i32 = arith.constant 1 : i32
    %3 = arith.muli %arg0, %c1_i32 : i32
    %4 = arith.addi %3, %arg1 : i32
    %c128_i32 = arith.constant 128 : i32
    %5 = arith.muli %4, %c128_i32 : i32
    %c0 = arith.constant 0 : index
    %c0_1 = arith.constant 0 : index
    %6 = vector.load %arg2[%c0, %c0_1] : memref<128x128xbf16, #tpu.memory_space<vmem>>, vector<128x128xbf16>
    %7 = arith.extf %6 : vector<128x128xbf16> to vector<128x128xf32>
    %cst = arith.constant 2.000000e+01 : f32
    %8 = vector.broadcast %cst : f32 to vector<128x128xf32>
    %9 = arith.mulf %7, %8 : vector<128x128xf32>
    %cst_2 = arith.constant 2.000000e+01 : f32
    %10 = vector.broadcast %cst_2 : f32 to vector<128x128xf32>
    %11 = arith.subf %9, %10 : vector<128x128xf32>
    %12 = math.exp %11 : vector<128x128xf32>
    %c0_3 = arith.constant 0 : index
    %c0_4 = arith.constant 0 : index
    %c0_5 = arith.constant 0 : index
    %13 = vector.load %arg3[%c0_3, %c0_4, %c0_5] : memref<1x1x128xf32, #tpu.memory_space<vmem>>, vector<1x1x128xf32>
    %14 = vector.shape_cast %13 : vector<1x1x128xf32> to vector<1x128xf32>
    %cst_6 = arith.constant dense<0.000000e+00> : vector<128xf32>
    %15 = vector.multi_reduction <add>, %12, %cst_6 [0] : vector<128x128xf32> to vector<128xf32>
    %16 = vector.shape_cast %15 : vector<128xf32> to vector<1x128xf32>
    %17 = arith.addf %14, %16 : vector<1x128xf32>
    %c0_7 = arith.constant 0 : index
    %c0_8 = arith.constant 0 : index
    %c0_9 = arith.constant 0 : index
    %18 = vector.load %arg3[%c0_7, %c0_8, %c0_9] : memref<1x1x128xf32, #tpu.memory_space<vmem>>, vector<1x1x128xf32>
    %19 = vector.shape_cast %18 : vector<1x1x128xf32> to vector<1x128xf32>
    %20 = vector.shape_cast %17 : vector<1x128xf32> to vector<1x1x128xf32>
    tpu.vector_store %arg3[%c0_7, %c0_8, %c0_9], %20 {strides = array<i32>} : memref<1x1x128xf32, #tpu.memory_space<vmem>>, vector<1x1x128xf32>,
    %cst_10 = arith.constant dense<0.000000e+00> : vector<128xf32>
    %21 = vector.multi_reduction <add>, %12, %cst_10 [1] : vector<128x128xf32> to vector<128xf32>
    %22 = vector.shape_cast %21 : vector<128xf32> to vector<128x1xf32>
    %23 = tpu.iota {dimensions = array<i32: 0>} : vector<128x1xi32>
    %24 = vector.broadcast %5 : i32 to vector<128x1xi32>
    %25 = arith.addi %23, %24 : vector<128x1xi32>
    %c8_i32 = arith.constant 8 : i32
    %26 = vector.broadcast %c8_i32 : i32 to vector<128x1xi32>
    %27 = arith.cmpi slt, %25, %26 : vector<128x1xi32>
    %cst_11 = arith.constant 1.000000e+00 : f32
    %28 = vector.broadcast %cst_11 : f32 to vector<128x1xf32>
    %29 = arith.select %27, %22, %28 : vector<128x1xi1>, vector<128x1xf32>
    %30 = math.log %29 : vector<128x1xf32>
    %cst_12 = arith.constant 2.000000e+01 : f32
    %31 = vector.broadcast %cst_12 : f32 to vector<128x1xf32>
    %32 = arith.addf %30, %31 : vector<128x1xf32>
    %33 = tpu.assume_multiple %5, 128 : i32
    %c0_13 = arith.constant 0 : index
    %34 = arith.index_cast %33 : i32 to index
    %35 = vector.load %arg2[%c0_13, %34] : memref<128x128xbf16, #tpu.memory_space<vmem>>, vector<128x128xbf16>
    %36 = arith.extf %35 : vector<128x128xbf16> to vector<128x128xf32>
    %cst_14 = arith.constant 2.000000e+01 : f32
    %37 = vector.broadcast %cst_14 : f32 to vector<128x128xf32>
    %38 = arith.mulf %36, %37 : vector<128x128xf32>
    %39 = tpu.iota {dimensions = array<i32: 0>} : vector<128x128xi32>
    %40 = tpu.iota {dimensions = array<i32: 1>} : vector<128x128xi32>
    %41 = arith.cmpi eq, %39, %40 : vector<128x128xi32>
    %cst_15 = arith.constant 2.000000e+00 : f32
    %42 = vector.broadcast %cst_15 : f32 to vector<128x128xf32>
    %43 = arith.mulf %42, %38 : vector<128x128xf32>
    %44 = vector.broadcast %32 : vector<128x1xf32> to vector<128x128xf32>
    %45 = arith.subf %43, %44 : vector<128x128xf32>
    %cst_16 = arith.constant 0.000000e+00 : f32
    %46 = vector.broadcast %cst_16 : f32 to vector<128x128xf32>
    %47 = arith.select %41, %45, %46 : vector<128x128xi1>, vector<128x128xf32>
    %cst_17 = arith.constant dense<0.000000e+00> : vector<128xf32>
    %48 = vector.multi_reduction <add>, %47, %cst_17 [0] : vector<128x128xf32> to vector<128xf32>
    %49 = vector.shape_cast %48 : vector<128xf32> to vector<1x128xf32>
    %c0_18 = arith.constant 0 : index
    %c0_19 = arith.constant 0 : index
    %50 = arith.index_cast %33 : i32 to index
    %51 = vector.load %arg4[%c0_18, %c0_19, %50] : memref<1x1x128xf32, #tpu.memory_space<vmem>>, vector<1x1x128xf32>
    %52 = vector.shape_cast %51 : vector<1x1x128xf32> to vector<1x128xf32>
    %53 = vector.shape_cast %49 : vector<1x128xf32> to vector<1x1x128xf32>
    tpu.vector_store %arg4[%c0_18, %c0_19, %50], %53 {strides = array<i32>} : memref<1x1x128xf32, #tpu.memory_space<vmem>>, vector<1x1x128xf32>,
    return
  }
  func.func @transform_0(%arg0: i32, %arg1: i32) -> (i32, i32) {
    %c1_i32 = arith.constant 1 : i32
    %0 = arith.muli %arg0, %c1_i32 : i32
    %1 = arith.addi %0, %arg1 : i32
    %c0_i32 = arith.constant 0 : i32
    %c0_i32_0 = arith.constant 0 : i32
    return %1, %c0_i32 : i32, i32
  }
  func.func @transform_1(%arg0: i32, %arg1: i32) -> (i32, i32, i32) {
    %c0_i32 = arith.constant 0 : i32
    %c0_i32_0 = arith.constant 0 : i32
    %c0_i32_1 = arith.constant 0 : i32
    return %arg0, %c0_i32, %c0_i32_0 : i32, i32, i32
  }
  func.func @transform_2(%arg0: i32, %arg1: i32) -> (i32, i32, i32) {
    %c0_i32 = arith.constant 0 : i32
    %c0_i32_0 = arith.constant 0 : i32
    %c0_i32_1 = arith.constant 0 : i32
    return %arg0, %c0_i32, %c0_i32_0 : i32, i32, i32
  }
}

</mosaic_0001>

<llo_original>
// kernel: tpu_custom_call.1
$region0: #{tpu_custom_call.1}
  #allocation0 [shape = 'u32[]', space=smem, size = 0x4, offset = 0x4, fixed_abs, tag = 'smem constant byte address 0x4 - core index']
  #allocation1 [shape = 'u32[144,128]{1,0:T(1,128)}', space=vmem, size = 0x12000, scoped, tag = 'internal scratch']
  %s0 = inlined_call_operand.hbm [shape: bf16[128,128], index: 0, kind: input, shape index: {}]
  %s1 = inlined_call_operand.hbm [shape: f32[1,1,128], index: 1, kind: output, shape index: {0}]
  %s2 = inlined_call_operand.hbm [shape: f32[1,1,128], index: 2, kind: output, shape index: {1}]
  %3 = xla_tuple %s1, %s2
  %s4 = sld [smem:[#allocation0]]
  $region30: #{tpu_custom_call.1} parent=0
    _
  %s6 = ssub.s32 1, %s4
  %s7 = scalar_select 0, %s6, %s4
  $region1: #{tpu_custom_call.1} parent=0
    #allocation2 [shape = 'u8[32768]{0}', space=vmem, size = 0x8000, scoped, tag = 'input window, operand 0, single buffered']
    #allocation3 [shape = 's32[1]{0}', space=sflag, size = 0x4, scoped, tag = 'scoped memory for tpu_custom_call.1']
    #allocation4 [shape = 's32[1]{0}', space=sflag, size = 0x4, scoped, tag = 'scoped memory for tpu_custom_call.1']
    #allocation5 [shape = 'u8[512]{0}', space=vmem, size = 0x400, scoped, tag = 'output window, operand 0, single buffered']
    #allocation6 [shape = 'u8[512]{0}', space=vmem, size = 0x400, scoped, tag = 'output window, operand 1, single buffered']
    #allocation7 [shape = 's32[1]{0}', space=sflag, size = 0x4, scoped, tag = 'scoped memory for tpu_custom_call.1']
    %8 = vsyncpa [#allocation3], 0
    %9 = vsyncpa [#allocation4], 0
    %10 = vsyncpa [#allocation7], 0
    // Predicated region
    $region2: #{tpu_custom_call.1} parent=1 // pred_check
      _
    $region3: #{tpu_custom_call.1} parent=1 // pred_check_branch
      %12 = sbr.rel (0) target = $region5
    $region4: #{tpu_custom_call.1} parent=1 // pred_region
      %s13 = sadd.s32 0, 0
      %s14 = smul.u32 16, %s13
      %s16 = ssub.s32 1024, 1024
      %17 = vsyncadd [#allocation3], %s16
      %s18 = smul.addr %s14, 64
      %s19 = scalar_lea.hbm %s0, %s18
      %s20 = sshll.u32 [#allocation2], 4
      %s21 = int_to_ptr.vmem [resolvable:$true] %s20
      %26 = dma.hbm_to_vmem [thread:$0]  %s19, 1024, %s21, [#allocation3], 64, 64, 4
    $region5: #{tpu_custom_call.1} parent=1 // pred_fallthru
      _
    // Predicated region
    $region6: #{tpu_custom_call.1} parent=1 // pred_check
      _
    $region7: #{tpu_custom_call.1} parent=1 // pred_check_branch
      %28 = sbr.rel (0) target = $region9
    $region8: #{tpu_custom_call.1} parent=1 // pred_region
      %29 = dma.done [#allocation3], 1024
    $region9: #{tpu_custom_call.1} parent=1 // pred_fallthru
      _
    %s30 = sadd.s32 0, 0
    %s31 = smul.u32 16, %s30
    %p32 = scmp.eq.s32.totalorder 0, 0
    // Predicated region
    $region10: #{tpu_custom_call.1} parent=1 // pred_check
      %p33 = pneg %p32
    $region11: #{tpu_custom_call.1} parent=1 // pred_check_branch
      %35 = sbr.rel (%p33) target = $region13
    $region12: #{tpu_custom_call.1} parent=1 // pred_region
      %36 = vst [vmem:[#allocation5] sm:$0x1] 0.0
      %37 = vst [vmem:[#allocation6] sm:$0x1] 0.0
    $region13: #{tpu_custom_call.1} parent=1 // pred_fallthru
      _
    %s38 = sadd.s32 0, 0
    %s39 = smul.u32 %s38, 128
    %v40 = vld [vmem:[#allocation2] sm:$0xf]
    %v41 = vld [vmem:[#allocation2 + $0x4] sm:$0xf]
    %v42 = vld [vmem:[#allocation2 + $0x8] sm:$0xf]
    %v43 = vld [vmem:[#allocation2 + $0xc] sm:$0xf]
    %v44 = vld [vmem:[#allocation2 + $0x10] sm:$0xf]
    %v45 = vld [vmem:[#allocation2 + $0x14] sm:$0xf]
    %v46 = vld [vmem:[#allocation2 + $0x18] sm:$0xf]
    %v47 = vld [vmem:[#allocation2 + $0x1c] sm:$0xf]
    %v48 = vld [vmem:[#allocation2 + $0x20] sm:$0xf]
    %v49 = vld [vmem:[#allocation2 + $0x24] sm:$0xf]
    %v50 = vld [vmem:[#allocation2 + $0x28] sm:$0xf]
    %v51 = vld [vmem:[#allocation2 + $0x2c] sm:$0xf]
    %v52 = vld [vmem:[#allocation2 + $0x30] sm:$0xf]
    %v53 = vld [vmem:[#allocation2 + $0x34] sm:$0xf]
    %v54 = vld [vmem:[#allocation2 + $0x38] sm:$0xf]
    %v55 = vld [vmem:[#allocation2 + $0x3c] sm:$0xf]
    %v56 = vunpack.c.l.bf16 %v40
    %v57 = vunpack.c.l.bf16 %v41
    %v58 = vunpack.c.l.bf16 %v42
    %v59 = vunpack.c.l.bf16 %v43
    %v60 = vunpack.c.l.bf16 %v44
    %v61 = vunpack.c.l.bf16 %v45
    %v62 = vunpack.c.l.bf16 %v46
    %v63 = vunpack.c.l.bf16 %v47
    %v64 = vunpack.c.l.bf16 %v48
    %v65 = vunpack.c.l.bf16 %v49
    %v66 = vunpack.c.l.bf16 %v50
    %v67 = vunpack.c.l.bf16 %v51
    %v68 = vunpack.c.l.bf16 %v52
    %v69 = vunpack.c.l.bf16 %v53
    %v70 = vunpack.c.l.bf16 %v54
    %v71 = vunpack.c.l.bf16 %v55
    %v72 = vmul.f32 %v56, 20.0
    %v73 = vmul.f32 %v57, 20.0
    %v74 = vmul.f32 %v58, 20.0
    %v75 = vmul.f32 %v59, 20.0
    %v76 = vmul.f32 %v60, 20.0
    %v77 = vmul.f32 %v61, 20.0
    %v78 = vmul.f32 %v62, 20.0
    %v79 = vmul.f32 %v63, 20.0
    %v80 = vmul.f32 %v64, 20.0
    %v81 = vmul.f32 %v65, 20.0
    %v82 = vmul.f32 %v66, 20.0
    %v83 = vmul.f32 %v67, 20.0
    %v84 = vmul.f32 %v68, 20.0
    %v85 = vmul.f32 %v69, 20.0
    %v86 = vmul.f32 %v70, 20.0
    %v87 = vmul.f32 %v71, 20.0
    %v88 = vsub.f32 %v72, 20.0
    %v89 = vsub.f32 %v73, 20.0
    %v90 = vsub.f32 %v74, 20.0
    %v91 = vsub.f32 %v75, 20.0
    %v92 = vsub.f32 %v76, 20.0
    %v93 = vsub.f32 %v77, 20.0
    %v94 = vsub.f32 %v78, 20.0
    %v95 = vsub.f32 %v79, 20.0
    %v96 = vsub.f32 %v80, 20.0
    %v97 = vsub.f32 %v81, 20.0
    %v98 = vsub.f32 %v82, 20.0
    %v99 = vsub.f32 %v83, 20.0
    %v100 = vsub.f32 %v84, 20.0
    %v101 = vsub.f32 %v85, 20.0
    %v102 = vsub.f32 %v86, 20.0
    %v103 = vsub.f32 %v87, 20.0
    %v104 = vmul.f32 %v88, 1.442695
    %v105 = vpow.pop %v104
    %v106 = vmul.f32 %v89, 1.442695
    %v107 = vpow.pop %v106
    %v108 = vmul.f32 %v90, 1.442695
    %v109 = vpow.pop %v108
    %v110 = vmul.f32 %v91, 1.442695
    %v111 = vpow.pop %v110
    %v112 = vmul.f32 %v92, 1.442695
    %v113 = vpow.pop %v112
    %v114 = vmul.f32 %v93, 1.442695
    %v115 = vpow.pop %v114
    %v116 = vmul.f32 %v94, 1.442695
    %v117 = vpow.pop %v116
    %v118 = vmul.f32 %v95, 1.442695
    %v119 = vpow.pop %v118
    %v120 = vmul.f32 %v96, 1.442695
    %v121 = vpow.pop %v120
    %v122 = vmul.f32 %v97, 1.442695
    %v123 = vpow.pop %v122
    %v124 = vmul.f32 %v98, 1.442695
    %v125 = vpow.pop %v124
    %v126 = vmul.f32 %v99, 1.442695
    %v127 = vpow.pop %v126
    %v128 = vmul.f32 %v100, 1.442695
    %v129 = vpow.pop %v128
    %v130 = vmul.f32 %v101, 1.442695
    %v131 = vpow.pop %v130
    %v132 = vmul.f32 %v102, 1.442695
    %v133 = vpow.pop %v132
    %v134 = vmul.f32 %v103, 1.442695
    %v135 = vpow.pop %v134
    %v136 = vld [vmem:[#allocation5] sm:$0x1]
    %v137 = vadd.f32 %v105, %v107
    %v138 = vadd.f32 %v137, %v109
    %v139 = vadd.f32 %v138, %v111
    %v140 = vadd.f32 %v139, %v113
    %v141 = vadd.f32 %v140, %v115
    %v142 = vadd.f32 %v141, %v117
    %v143 = vadd.f32 %v142, %v119
    %v144 = vadd.f32 %v143, %v121
    %v145 = vadd.f32 %v144, %v123
    %v146 = vadd.f32 %v145, %v125
    %v147 = vadd.f32 %v146, %v127
    %v148 = vadd.f32 %v147, %v129
    %v149 = vadd.f32 %v148, %v131
    %v150 = vadd.f32 %v149, %v133
    %v151 = vadd.f32 %v150, %v135
    %v152 = vrot.slane %v151, 4
    %v153 = vadd.f32 %v151, %v152
    %v154 = vrot.slane %v153, 2
    %v155 = vadd.f32 %v153, %v154
    %v156 = vrot.slane %v155, 1
    %v157 = vadd.f32 %v155, %v156
    %v158 = vadd.f32 %v136, %v157
    %159 = vst [vmem:[#allocation5] sm:$0x1] %v158
    %160 = vadd.xlane.f32.xlu0 %v105
    %v161 = vpop.xlane.xlu0 %160
    %162 = vadd.xlane.f32.xlu0 %v107
    %v163 = vpop.xlane.xlu0 %162
    %164 = vadd.xlane.f32.xlu0 %v109
    %v165 = vpop.xlane.xlu0 %164
    %166 = vadd.xlane.f32.xlu0 %v111
    %v167 = vpop.xlane.xlu0 %166
    %168 = vadd.xlane.f32.xlu0 %v113
    %v169 = vpop.xlane.xlu0 %168
    %170 = vadd.xlane.f32.xlu0 %v115
    %v171 = vpop.xlane.xlu0 %170
    %172 = vadd.xlane.f32.xlu0 %v117
    %v173 = vpop.xlane.xlu0 %172
    %174 = vadd.xlane.f32.xlu0 %v119
    %v175 = vpop.xlane.xlu0 %174
    %176 = vadd.xlane.f32.xlu0 %v121
    %v177 = vpop.xlane.xlu0 %176
    %178 = vadd.xlane.f32.xlu0 %v123
    %v179 = vpop.xlane.xlu0 %178
    %180 = vadd.xlane.f32.xlu0 %v125
    %v181 = vpop.xlane.xlu0 %180
    %182 = vadd.xlane.f32.xlu0 %v127
    %v183 = vpop.xlane.xlu0 %182
    %184 = vadd.xlane.f32.xlu0 %v129
    %v185 = vpop.xlane.xlu0 %184
    %186 = vadd.xlane.f32.xlu0 %v131
    %v187 = vpop.xlane.xlu0 %186
    %188 = vadd.xlane.f32.xlu0 %v133
    %v189 = vpop.xlane.xlu0 %188
    %190 = vadd.xlane.f32.xlu0 %v135
    %v191 = vpop.xlane.xlu0 %190
    %v192 = vlaneseq
    %v193 = vshrl.u32 %v192, 7
    %v194 = vadd.s32 %v193, 8
    %v195 = vadd.s32 %v193, 16
    %v196 = vadd.s32 %v193, 24
    %v197 = vadd.s32 %v193, 32
    %v198 = vadd.s32 %v193, 40
    %v199 = vadd.s32 %v193, 48
    %v200 = vadd.s32 %v193, 56
    %v201 = vadd.s32 %v193, 64
    %v202 = vadd.s32 %v193, 72
    %v203 = vadd.s32 %v193, 80
    %v204 = vadd.s32 %v193, 88
    %v205 = vadd.s32 %v193, 96
    %v206 = vadd.s32 %v193, 104
    %v207 = vadd.s32 %v193, 112
    %v208 = vadd.s32 %v193, 120
    %v209 = vstv %s39
    %v210 = vadd.s32 %v193, %v209
    %v211 = vadd.s32 %v194, %v209
    %v212 = vadd.s32 %v195, %v209
    %v213 = vadd.s32 %v196, %v209
    %v214 = vadd.s32 %v197, %v209
    %v215 = vadd.s32 %v198, %v209
    %v216 = vadd.s32 %v199, %v209
    %v217 = vadd.s32 %v200, %v209
    %v218 = vadd.s32 %v201, %v209
    %v219 = vadd.s32 %v202, %v209
    %v220 = vadd.s32 %v203, %v209
    %v221 = vadd.s32 %v204, %v209
    %v222 = vadd.s32 %v205, %v209
    %v223 = vadd.s32 %v206, %v209
    %v224 = vadd.s32 %v207, %v209
    %v225 = vadd.s32 %v208, %v209
    %vm226 = vcmp.lt.s32.totalorder %v210, 8
    %vm227 = vcmp.lt.s32.totalorder %v211, 8
    %vm228 = vcmp.lt.s32.totalorder %v212, 8
    %vm229 = vcmp.lt.s32.totalorder %v213, 8
    %vm230 = vcmp.lt.s32.totalorder %v214, 8
    %vm231 = vcmp.lt.s32.totalorder %v215, 8
    %vm232 = vcmp.lt.s32.totalorder %v216, 8
    %vm233 = vcmp.lt.s32.totalorder %v217, 8
    %vm234 = vcmp.lt.s32.totalorder %v218, 8
    %vm235 = vcmp.lt.s32.totalorder %v219, 8
    %vm236 = vcmp.lt.s32.totalorder %v220, 8
    %vm237 = vcmp.lt.s32.totalorder %v221, 8
    %vm238 = vcmp.lt.s32.totalorder %v222, 8
    %vm239 = vcmp.lt.s32.totalorder %v223, 8
    %vm240 = vcmp.lt.s32.totalorder %v224, 8
    %vm241 = vcmp.lt.s32.totalorder %v225, 8
    %v242 = vsel %vm226, %v161, 1.0
    %v243 = vsel %vm227, %v163, 1.0
    %v244 = vsel %vm228, %v165, 1.0
    %v245 = vsel %vm229, %v167, 1.0
    %v246 = vsel %vm230, %v169, 1.0
    %v247 = vsel %vm231, %v171, 1.0
    %v248 = vsel %vm232, %v173, 1.0
    %v249 = vsel %vm233, %v175, 1.0
    %v250 = vsel %vm234, %v177, 1.0
    %v251 = vsel %vm235, %v179, 1.0
    %v252 = vsel %vm236, %v181, 1.0
    %v253 = vsel %vm237, %v183, 1.0
    %v254 = vsel %vm238, %v185, 1.0
    %v255 = vsel %vm239, %v187, 1.0
    %v256 = vsel %vm240, %v189, 1.0
    %v257 = vsel %vm241, %v191, 1.0
    %v258 = vlog2.pop %v242
    %v259 = vmul.f32 %v258, 0.6931472
    %v260 = vlog2.pop %v243
    %v261 = vmul.f32 %v260, 0.6931472
    %v262 = vlog2.pop %v244
    %v263 = vmul.f32 %v262, 0.6931472
    %v264 = vlog2.pop %v245
    %v265 = vmul.f32 %v264, 0.6931472
    %v266 = vlog2.pop %v246
    %v267 = vmul.f32 %v266, 0.6931472
    %v268 = vlog2.pop %v247
    %v269 = vmul.f32 %v268, 0.6931472
    %v270 = vlog2.pop %v248
    %v271 = vmul.f32 %v270, 0.6931472
    %v272 = vlog2.pop %v249
    %v273 = vmul.f32 %v272, 0.6931472
    %v274 = vlog2.pop %v250
    %v275 = vmul.f32 %v274, 0.6931472
    %v276 = vlog2.pop %v251
    %v277 = vmul.f32 %v276, 0.6931472
    %v278 = vlog2.pop %v252
    %v279 = vmul.f32 %v278, 0.6931472
    %v280 = vlog2.pop %v253
    %v281 = vmul.f32 %v280, 0.6931472
    %v282 = vlog2.pop %v254
    %v283 = vmul.f32 %v282, 0.6931472
    %v284 = vlog2.pop %v255
    %v285 = vmul.f32 %v284, 0.6931472
    %v286 = vlog2.pop %v256
    %v287 = vmul.f32 %v286, 0.6931472
    %v288 = vlog2.pop %v257
    %v289 = vmul.f32 %v288, 0.6931472
    %v290 = vadd.f32 %v259, 20.0
    %v291 = vadd.f32 %v261, 20.0
    %v292 = vadd.f32 %v263, 20.0
    %v293 = vadd.f32 %v265, 20.0
    %v294 = vadd.f32 %v267, 20.0
    %v295 = vadd.f32 %v269, 20.0
    %v296 = vadd.f32 %v271, 20.0
    %v297 = vadd.f32 %v273, 20.0
    %v298 = vadd.f32 %v275, 20.0
    %v299 = vadd.f32 %v277, 20.0
    %v300 = vadd.f32 %v279, 20.0
    %v301 = vadd.f32 %v281, 20.0
    %v302 = vadd.f32 %v283, 20.0
    %v303 = vadd.f32 %v285, 20.0
    %v304 = vadd.f32 %v287, 20.0
    %v305 = vadd.f32 %v289, 20.0
    %s306 = sshra.s32 %s39, 7
    %s307 = sand.u32 %s39, 127
    %s308 = smul.addr %s306, 4
    %s309 = scalar_lea.vmem [#allocation2], %s308
    %v310 = vld [vmem:[%s309] sm:$0xf]
    %v311 = vld [vmem:[%s309 + $0x4] sm:$0xf]
    %v312 = vld [vmem:[%s309 + $0x8] sm:$0xf]
    %v313 = vld [vmem:[%s309 + $0xc] sm:$0xf]
    %v314 = vld [vmem:[%s309 + $0x10] sm:$0xf]
    %v315 = vld [vmem:[%s309 + $0x14] sm:$0xf]
    %v316 = vld [vmem:[%s309 + $0x18] sm:$0xf]
    %v317 = vld [vmem:[%s309 + $0x1c] sm:$0xf]
    %v318 = vld [vmem:[%s309 + $0x20] sm:$0xf]
    %v319 = vld [vmem:[%s309 + $0x24] sm:$0xf]
    %v320 = vld [vmem:[%s309 + $0x28] sm:$0xf]
    %v321 = vld [vmem:[%s309 + $0x2c] sm:$0xf]
    %v322 = vld [vmem:[%s309 + $0x30] sm:$0xf]
    %v323 = vld [vmem:[%s309 + $0x34] sm:$0xf]
    %v324 = vld [vmem:[%s309 + $0x38] sm:$0xf]
    %v325 = vld [vmem:[%s309 + $0x3c] sm:$0xf]
    %v326 = vunpack.c.l.bf16 %v310
    %v327 = vunpack.c.l.bf16 %v311
    %v328 = vunpack.c.l.bf16 %v312
    %v329 = vunpack.c.l.bf16 %v313
    %v330 = vunpack.c.l.bf16 %v314
    %v331 = vunpack.c.l.bf16 %v315
    %v332 = vunpack.c.l.bf16 %v316
    %v333 = vunpack.c.l.bf16 %v317
    %v334 = vunpack.c.l.bf16 %v318
    %v335 = vunpack.c.l.bf16 %v319
    %v336 = vunpack.c.l.bf16 %v320
    %v337 = vunpack.c.l.bf16 %v321
    %v338 = vunpack.c.l.bf16 %v322
    %v339 = vunpack.c.l.bf16 %v323
    %v340 = vunpack.c.l.bf16 %v324
    %v341 = vunpack.c.l.bf16 %v325
    %v342 = vmul.f32 %v326, 20.0
    %v343 = vmul.f32 %v327, 20.0
    %v344 = vmul.f32 %v328, 20.0
    %v345 = vmul.f32 %v329, 20.0
    %v346 = vmul.f32 %v330, 20.0
    %v347 = vmul.f32 %v331, 20.0
    %v348 = vmul.f32 %v332, 20.0
    %v349 = vmul.f32 %v333, 20.0
    %v350 = vmul.f32 %v334, 20.0
    %v351 = vmul.f32 %v335, 20.0
    %v352 = vmul.f32 %v336, 20.0
    %v353 = vmul.f32 %v337, 20.0
    %v354 = vmul.f32 %v338, 20.0
    %v355 = vmul.f32 %v339, 20.0
    %v356 = vmul.f32 %v340, 20.0
    %v357 = vmul.f32 %v341, 20.0
    %v358 = vlaneseq
    %v359 = vand.u32 %v358, 127
    %vm360 = vcmp.eq.s32.totalorder %v193, %v359
    %vm361 = vcmp.eq.s32.totalorder %v194, %v359
    %vm362 = vcmp.eq.s32.totalorder %v195, %v359
    %vm363 = vcmp.eq.s32.totalorder %v196, %v359
    %vm364 = vcmp.eq.s32.totalorder %v197, %v359
    %vm365 = vcmp.eq.s32.totalorder %v198, %v359
    %vm366 = vcmp.eq.s32.totalorder %v199, %v359
    %vm367 = vcmp.eq.s32.totalorder %v200, %v359
    %vm368 = vcmp.eq.s32.totalorder %v201, %v359
    %vm369 = vcmp.eq.s32.totalorder %v202, %v359
    %vm370 = vcmp.eq.s32.totalorder %v203, %v359
    %vm371 = vcmp.eq.s32.totalorder %v204, %v359
    %vm372 = vcmp.eq.s32.totalorder %v205, %v359
    %vm373 = vcmp.eq.s32.totalorder %v206, %v359
    %vm374 = vcmp.eq.s32.totalorder %v207, %v359
    %vm375 = vcmp.eq.s32.totalorder %v208, %v359
    %v376 = vmul.f32 %v342, 2.0
    %v377 = vmul.f32 %v343, 2.0
    %v378 = vmul.f32 %v344, 2.0
    %v379 = vmul.f32 %v345, 2.0
    %v380 = vmul.f32 %v346, 2.0
    %v381 = vmul.f32 %v347, 2.0
    %v382 = vmul.f32 %v348, 2.0
    %v383 = vmul.f32 %v349, 2.0
    %v384 = vmul.f32 %v350, 2.0
    %v385 = vmul.f32 %v351, 2.0
    %v386 = vmul.f32 %v352, 2.0
    %v387 = vmul.f32 %v353, 2.0
    %v388 = vmul.f32 %v354, 2.0
    %v389 = vmul.f32 %v355, 2.0
    %v390 = vmul.f32 %v356, 2.0
    %v391 = vmul.f32 %v357, 2.0
    %v392 = vsub.f32 %v376, %v290
    %v393 = vsub.f32 %v377, %v291
    %v394 = vsub.f32 %v378, %v292
    %v395 = vsub.f32 %v379, %v293
    %v396 = vsub.f32 %v380, %v294
    %v397 = vsub.f32 %v381, %v295
    %v398 = vsub.f32 %v382, %v296
    %v399 = vsub.f32 %v383, %v297
    %v400 = vsub.f32 %v384, %v298
    %v401 = vsub.f32 %v385, %v299
    %v402 = vsub.f32 %v386, %v300
    %v403 = vsub.f32 %v387, %v301
    %v404 = vsub.f32 %v388, %v302
    %v405 = vsub.f32 %v389, %v303
    %v406 = vsub.f32 %v390, %v304
    %v407 = vsub.f32 %v391, %v305
    %v408 = vsel %vm360, %v392, 0.0
    %v409 = vsel %vm361, %v393, 0.0
    %v410 = vsel %vm362, %v394, 0.0
    %v411 = vsel %vm363, %v395, 0.0
    %v412 = vsel %vm364, %v396, 0.0
    %v413 = vsel %vm365, %v397, 0.0
    %v414 = vsel %vm366, %v398, 0.0
    %v415 = vsel %vm367, %v399, 0.0
    %v416 = vsel %vm368, %v400, 0.0
    %v417 = vsel %vm369, %v401, 0.0
    %v418 = vsel %vm370, %v402, 0.0
    %v419 = vsel %vm371, %v403, 0.0
    %v420 = vsel %vm372, %v404, 0.0
    %v421 = vsel %vm373, %v405, 0.0
    %v422 = vsel %vm374, %v406, 0.0
    %v423 = vsel %vm375, %v407, 0.0
    %v424 = vadd.f32 %v408, %v409
    %v425 = vadd.f32 %v424, %v410
    %v426 = vadd.f32 %v425, %v411
    %v427 = vadd.f32 %v426, %v412
    %v428 = vadd.f32 %v427, %v413
    %v429 = vadd.f32 %v428, %v414
    %v430 = vadd.f32 %v429, %v415
    %v431 = vadd.f32 %v430, %v416
    %v432 = vadd.f32 %v431, %v417
    %v433 = vadd.f32 %v432, %v418
    %v434 = vadd.f32 %v433, %v419
    %v435 = vadd.f32 %v434, %v420
    %v436 = vadd.f32 %v435, %v421
    %v437 = vadd.f32 %v436, %v422
    %v438 = vadd.f32 %v437, %v423
    %v439 = vrot.slane %v438, 4
    %v440 = vadd.f32 %v438, %v439
    %v441 = vrot.slane %v440, 2
    %v442 = vadd.f32 %v440, %v441
    %v443 = vrot.slane %v442, 1
    %v444 = vadd.f32 %v442, %v443
    %s445 = scalar_lea.vmem [#allocation6], %s306
    %446 = vst [vmem:[%s445] sm:$0x1] %v444
    // Predicated region
    $region14: #{tpu_custom_call.1} parent=1 // pred_check
      _
    $region15: #{tpu_custom_call.1} parent=1 // pred_check_branch
      %448 = sbr.rel (0) target = $region17
    $region16: #{tpu_custom_call.1} parent=1 // pred_region
      %s450 = ssub.s32 16, 16
      %451 = vsyncadd [#allocation4], %s450
      %s453 = sshll.u32 [#allocation5], 4
      %s454 = int_to_ptr.vmem [resolvable:$true] %s453
      %456 = dma.vmem_to_hbm [thread:$0]  %s454, 16, %s1, [#allocation4]
    $region17: #{tpu_custom_call.1} parent=1 // pred_fallthru
      _
    // Predicated region
    $region18: #{tpu_custom_call.1} parent=1 // pred_check
      _
    $region19: #{tpu_custom_call.1} parent=1 // pred_check_branch
      %458 = sbr.rel (0) target = $region21
    $region20: #{tpu_custom_call.1} parent=1 // pred_region
      %s460 = ssub.s32 16, 16
      %461 = vsyncadd [#allocation7], %s460
      %s463 = sshll.u32 [#allocation6], 4
      %s464 = int_to_ptr.vmem [resolvable:$true] %s463
      %466 = dma.vmem_to_hbm [thread:$0]  %s464, 16, %s2, [#allocation7]
    $region21: #{tpu_custom_call.1} parent=1 // pred_fallthru
      _
    // Predicated region
    $region22: #{tpu_custom_call.1} parent=1 // pred_check
      _
    $region23: #{tpu_custom_call.1} parent=1 // pred_check_branch
      %468 = sbr.rel (0) target = $region25
    $region24: #{tpu_custom_call.1} parent=1 // pred_region
      %469 = dma.done [#allocation4], 16
    $region25: #{tpu_custom_call.1} parent=1 // pred_fallthru
      _
    // Predicated region
    $region26: #{tpu_custom_call.1} parent=1 // pred_check
      _
    $region27: #{tpu_custom_call.1} parent=1 // pred_check_branch
      %471 = sbr.rel (0) target = $region29
    $region28: #{tpu_custom_call.1} parent=1 // pred_region
      %472 = dma.done [#allocation7], 16
    $region29: #{tpu_custom_call.1} parent=1 // pred_fallthru
      _
    %473 = vsyncpa [#allocation3], 1
    %474 = vsyncpa [#allocation4], 1
    %475 = vsyncpa [#allocation7], 1

</llo_original>
